<compile_context>
chip_gen: v6e
topology: v6e:2x2x1
jax: 0.10.0
libtpu: 0.0.40
codegen_flags: <defaults>
</compile_context>

<pallas_src>
import jax
import jax.numpy as jnp
from jax import lax
from jax.experimental import pallas as pl
from jax.experimental.pallas import tpu as pltpu


def _cdiv(a, b):
    return -(-a // b)


def _round_up(v, m):
    return _cdiv(v, m) * m


def _tpu_caps():
    """Return (vmem_capacity_bytes, tensorcores_per_chip) with safe fallbacks."""
    try:
        info = pltpu.get_tpu_info()
        vmem_cap = int(getattr(info, "vmem_capacity_bytes", 64 << 20))
        cores = int(getattr(info, "num_cores", 0) or
                    getattr(info, "tensorcores_per_chip", 0) or 0)
        if cores <= 0:
            # v7x exposes 64 MiB VMEM per TC and has 2 TCs/chip; v5e/v6e: 128 MiB, 1 TC.
            cores = 2 if vmem_cap <= (64 << 20) else 1
        return vmem_cap, cores
    except Exception:
        # Conservative cross-generation defaults (correct on every chip).
        return 64 << 20, 1


def idw_kernel(wrow_ref, x_ref, w_ref, b_ref, o_ref):
    # wrow_ref: (1,  In)  IDW row (grid-invariant)
    # x_ref:    (bm, In)  batch tile of inputs
    # w_ref:    (tn, In)  linear weight block in native nn.Linear layout
    # b_ref:    (1,  tn)  bias block (f32)
    # o_ref:    (bm, tn)  output tile
    # One VPU multiply; hides under the memory-bound DMA pipeline.
    xs = x_ref[...] * wrow_ref[...]
    # Transposed-B contraction is native to the MXU: (bm,In) x (tn,In) -> (bm,tn).
    y = lax.dot_general(xs, w_ref[...],
                        dimension_numbers=(((1,), (1,)), ((), ())),
                        preferred_element_type=jnp.float32)
    y = y + b_ref[...]
    # Sigmoid epilogue on the EUP.
    o_ref[...] = jax.nn.sigmoid(y).astype(o_ref.dtype)


def idw_forward(x, idweight, w_lin, b_lin, *, bm=None, out_dtype=None):
    """IDWLayer forward.

    x:        (B, In)         input batch
    idweight: (1, num_train)  IDW weights; In must be divisible by num_train
    w_lin:    (H, In)         nn.Linear.weight layout (NOT transposed)
    b_lin:    (H,)            nn.Linear.bias
    returns:  (B, H) in out_dtype (default x.dtype)
    """
    B, In = x.shape
    H, In_w = w_lin.shape
    assert In_w == In, "weight inner dim must match input_size"
    num_train = idweight.shape[1]
    assert In % num_train == 0, "input_size must be divisible by num_train"
    rep = In // num_train
    out_dtype = x.dtype if out_dtype is None else out_dtype
    auto_bm = bm is None

    # --- generation-aware budgets ---------------------------------------------
    vmem_cap, num_cores = _tpu_caps()
    big_vmem = vmem_cap >= (96 << 20)                    # v5e/v6e (128 MiB) vs v7x (64 MiB)
    stream_budget = (24 << 20) if big_vmem else (12 << 20)   # double-buffered x+out tiles
    weight_budget = (32 << 20) if big_vmem else (16 << 20)   # resident weight block
    vmem_ceiling = int(vmem_cap * 3 // 4)                # headroom for Mosaic scratch

    x_bytes = jnp.dtype(x.dtype).itemsize
    w_bytes = jnp.dtype(w_lin.dtype).itemsize
    o_bytes = jnp.dtype(out_dtype).itemsize

    # --- IDW row (tiny; no extra pass over the weight) ------------------------
    # repeat_each(idweight[0], rep): matches idweight.T * ones(...) -> reshape.
    wrow = jnp.repeat(idweight[0], rep).astype(x.dtype).reshape(1, In)

    # --- optional K padding: only for large, misaligned In --------------------
    In_p = In
    if In >= 512 and In % 128 != 0:
        In_p = _round_up(In, 128)
    if In_p != In:
        x = jnp.pad(x, ((0, 0), (0, In_p - In)))
        wrow = jnp.pad(wrow, ((0, 0), (0, In_p - In)))
        w_lin = jnp.pad(w_lin, ((0, 0), (0, In_p - In)))

    # --- hidden tiling: weight block stays resident across the batch sweep ----
    H_128 = _round_up(H, 128)                            # lane-dense output stores
    if In_p * H_128 * w_bytes <= weight_budget:
        tn = H_128
    else:
        tn = max(256, (weight_budget // (2 * In_p * w_bytes)) // 256 * 256)
        tn = min(tn, H_128)
    grid_h = _cdiv(H_128, tn)
    H_p = grid_h * tn
    w_p = w_lin if H_p == H else jnp.pad(w_lin, ((0, H_p - H), (0, 0)))
    b_row = b_lin.astype(jnp.float32).reshape(1, H)
    if H_p != H:
        b_row = jnp.pad(b_row, ((0, 0), (0, H_p - H)))

    # --- batch tiling ----------------------------------------------------------
    sub = max(8, 32 // x_bytes)                          # sublane multiple (8 f32 / 16 bf16)
    if auto_bm:
        row_bytes = 2 * (In_p * x_bytes + tn * o_bytes)  # double-buffered x + out rows
        cap = max(sub, min(4096, (stream_budget // row_bytes) // sub * sub))
        bm = min(cap, _round_up(B, sub))
        if num_cores > 1:
            # Only force a batch split when the chip actually has >1 TensorCore.
            per_core = max(sub, _round_up(_cdiv(B, num_cores), sub))
            bm = min(bm, per_core)
        bm = int(max(sub, bm))
    grid_b = _cdiv(B, bm)
    if auto_bm and num_cores > 1 and grid_b > num_cores and grid_b % num_cores:
        # Balance step count across TensorCores (avoid one TC doing an extra tile).
        grid_b = _round_up(grid_b, num_cores)
        bm = int(max(sub, _round_up(_cdiv(B, grid_b), sub)))
        grid_b = _cdiv(B, bm)
    B_p = grid_b * bm
    x_p = x if B_p == B else jnp.pad(x, ((0, B_p - B), (0, 0)))

    # --- VMEM request: actual footprint, capped well below physical VMEM -------
    need = (2 * bm * In_p * x_bytes        # x tile (double-buffered)
            + 2 * bm * tn * o_bytes        # out tile (double-buffered)
            + 2 * tn * In_p * w_bytes      # weight block
            + 2 * tn * 4                   # bias (f32)
            + 2 * In_p * x_bytes)          # IDW row
    vmem_limit = int(min(vmem_ceiling, max(need + (2 << 20), 16 << 20)))

    out_p = pl.pallas_call(
        idw_kernel,
        out_shape=jax.ShapeDtypeStruct((B_p, H_p), out_dtype),
        grid_spec=pltpu.PrefetchScalarGridSpec(
            num_scalar_prefetch=0,
            grid=(grid_h, grid_b),          # batch innermost: weight block resident
            in_specs=[
                pl.BlockSpec((1, In_p), lambda h, i: (0, 0)),    # wrow (grid-invariant)
                pl.BlockSpec((bm, In_p), lambda h, i: (i, 0)),   # x tile
                pl.BlockSpec((tn, In_p), lambda h, i: (h, 0)),   # W block, (H, In) layout
                pl.BlockSpec((1, tn), lambda h, i: (0, h)),      # bias block
            ],
            out_specs=pl.BlockSpec((bm, tn), lambda h, i: (i, h)),
        ),
        compiler_params=pltpu.CompilerParams(
            dimension_semantics=("parallel", "parallel"),
            vmem_limit_bytes=vmem_limit),
    )(wrow, x_p, w_p, b_row)

    return out_p[:B, :H]


if __name__ == "__main__":
    key = jax.random.PRNGKey(0)
    In, H, num_train = 32, 16, 8            # input_size divisible by num_train
    k1, k2, k3, k4 = jax.random.split(key, 4)

    idweight = jax.random.uniform(k2, (1, num_train), jnp.float32)
    # Deterministic nn.Linear(input_size, hidden_size)-style params.
    bound = 1.0 / (In ** 0.5)
    w_lin = jax.random.uniform(k3, (H, In), jnp.float32, -bound, bound)
    b_lin = jax.random.uniform(k4, (H,), jnp.float32, -bound, bound)

    rep = In // num_train
    wrow_ref = jnp.repeat(idweight[0], rep)

    def reference(x):
        return jax.nn.sigmoid((x * wrow_ref) @ w_lin.T + b_lin)

    # B=128 exercises the multi-step batch grid on multi-TC chips; B=50
    # exercises the ragged-batch path (cdiv grid + zero-pad + slice-back).
    for B in (128, 50):
        x = jax.random.normal(jax.random.fold_in(k1, B), (B, In), jnp.float32)
        out = jax.block_until_ready(idw_forward(x, idweight, w_lin, b_lin))
        ref = reference(x)
        assert out.shape == (B, H)
        assert jnp.allclose(out, ref, atol=1e-4), f"mismatch vs reference (B={B})"

    print("KERNEL_OK")
</pallas_src>

<mosaic_0001>
module attributes {stable_mosaic.version = 11 : i64} {
  func.func @idw_kernel(%arg0: i32, %arg1: i32, %arg2: memref<1x32xf32, #tpu.memory_space<vmem>>, %arg3: memref<128x32xf32, #tpu.memory_space<vmem>>, %arg4: memref<128x32xf32, #tpu.memory_space<vmem>>, %arg5: memref<1x128xf32, #tpu.memory_space<vmem>>, %arg6: memref<128x128xf32, #tpu.memory_space<vmem>>) attributes {dimension_semantics = [#tpu.dimension_semantics<parallel>, #tpu.dimension_semantics<parallel>], iteration_bounds = array<i64: 1, 1>, scalar_prefetch = 0 : i64, scratch_operands = 0 : i64, tpu.core_type = #tpu.core_type<tc>, window_params = [{pipeline_mode = #tpu.pipeline_mode<synchronous>, transform_indices = @transform_0, window_bounds = array<i64: 1, 32>}, {transform_indices = @transform_1, window_bounds = array<i64: 128, 32>}, {transform_indices = @transform_2, window_bounds = array<i64: 128, 32>}, {transform_indices = @transform_3, window_bounds = array<i64: 1, 128>}, {transform_indices = @transform_4, window_bounds = array<i64: 128, 128>}]} {
    %c0 = arith.constant 0 : index
    %c0_0 = arith.constant 0 : index
    %0 = vector.load %arg3[%c0, %c0_0] : memref<128x32xf32, #tpu.memory_space<vmem>>, vector<128x32xf32>
    %c0_1 = arith.constant 0 : index
    %c0_2 = arith.constant 0 : index
    %1 = vector.load %arg2[%c0_1, %c0_2] : memref<1x32xf32, #tpu.memory_space<vmem>>, vector<1x32xf32>
    %2 = vector.broadcast %1 : vector<1x32xf32> to vector<128x32xf32>
    %3 = arith.mulf %0, %2 : vector<128x32xf32>
    %c0_3 = arith.constant 0 : index
    %c0_4 = arith.constant 0 : index
    %4 = vector.load %arg4[%c0_3, %c0_4] : memref<128x32xf32, #tpu.memory_space<vmem>>, vector<128x32xf32>
    %cst = arith.constant dense<0.000000e+00> : vector<128x128xf32>
    %5 = tpu.matmul %3, %4, %cst {dimension_numbers = #tpu.dot_dimension_numbers<[1], [1], [0], [0], [0, 0, 1, 0], [], []>} : vector<128x32xf32>, vector<128x32xf32>, vector<128x128xf32> -> vector<128x128xf32>
    %c0_5 = arith.constant 0 : index
    %c0_6 = arith.constant 0 : index
    %6 = vector.load %arg5[%c0_5, %c0_6] : memref<1x128xf32, #tpu.memory_space<vmem>>, vector<1x128xf32>
    %7 = vector.broadcast %6 : vector<1x128xf32> to vector<128x128xf32>
    %8 = arith.addf %5, %7 : vector<128x128xf32>
    %9 = arith.negf %8 : vector<128x128xf32>
    %10 = math.exp %9 : vector<128x128xf32>
    %cst_7 = arith.constant 1.000000e+00 : f32
    %11 = vector.broadcast %cst_7 : f32 to vector<128x128xf32>
    %12 = arith.addf %11, %10 : vector<128x128xf32>
    %13 = arith.divf %11, %12 : vector<128x128xf32>
    %c0_8 = arith.constant 0 : index
    %c0_9 = arith.constant 0 : index
    %14 = vector.load %arg6[%c0_8, %c0_9] : memref<128x128xf32, #tpu.memory_space<vmem>>, vector<128x128xf32>
    tpu.vector_store %arg6[%c0_8, %c0_9], %13 {strides = array<i32>} : memref<128x128xf32, #tpu.memory_space<vmem>>, vector<128x128xf32>,
    return
  }
  func.func @transform_0(%arg0: i32, %arg1: i32) -> (i32, i32) {
    %c0_i32 = arith.constant 0 : i32
    %c0_i32_0 = arith.constant 0 : i32
    %c0_i32_1 = arith.constant 0 : i32
    return %c0_i32, %c0_i32_0 : i32, i32
  }
  func.func @transform_1(%arg0: i32, %arg1: i32) -> (i32, i32) {
    %c0_i32 = arith.constant 0 : i32
    %c0_i32_0 = arith.constant 0 : i32
    return %arg1, %c0_i32 : i32, i32
  }
  func.func @transform_2(%arg0: i32, %arg1: i32) -> (i32, i32) {
    %c0_i32 = arith.constant 0 : i32
    %c0_i32_0 = arith.constant 0 : i32
    return %arg0, %c0_i32 : i32, i32
  }
  func.func @transform_3(%arg0: i32, %arg1: i32) -> (i32, i32) {
    %c0_i32 = arith.constant 0 : i32
    %c0_i32_0 = arith.constant 0 : i32
    return %c0_i32, %arg0 : i32, i32
  }
  func.func @transform_4(%arg0: i32, %arg1: i32) -> (i32, i32) {
    %c0_i32 = arith.constant 0 : i32
    return %arg1, %arg0 : i32, i32
  }
}

</mosaic_0001>

<llo_original>
// kernel: tpu_custom_call.1
$region0: #{tpu_custom_call.1}
  #allocation0 [shape = 'u32[]', space=smem, size = 0x4, offset = 0x4, fixed_abs, tag = 'smem constant byte address 0x4 - core index']
  #allocation1 [shape = 'u32[144,128]{1,0:T(1,128)}', space=vmem, size = 0x12000, scoped, tag = 'internal scratch']
  %s0 = inlined_call_operand.vmem [shape: f32[1,32], index: 0, kind: input, shape index: {}]
  %s1 = inlined_call_operand.vmem [shape: f32[128,32], index: 1, kind: input, shape index: {}]
  %s2 = inlined_call_operand.vmem [shape: f32[128,32], index: 2, kind: input, shape index: {}]
  %s3 = inlined_call_operand.vmem [shape: f32[1,128], index: 3, kind: input, shape index: {}]
  %s4 = inlined_call_operand.hbm [shape: f32[128,128], index: 4, kind: output, shape index: {}]
  %s5 = sld [smem:[#allocation0]]
  $region26: #{tpu_custom_call.1} parent=0
    _
  %s7 = ssub.s32 1, %s5
  %s8 = scalar_select 0, %s7, %s5
  $region1: #{tpu_custom_call.1} parent=0
    #allocation2 [shape = 'u8[65536]{0}', space=vmem, size = 0x10000, scoped, tag = 'output window, operand 0, single buffered']
    #allocation3 [shape = 's32[1]{0}', space=sflag, size = 0x4, scoped, tag = 'scoped memory for tpu_custom_call.1']
    %9 = vsyncpa [#allocation3], 0
    // Predicated region
    $region2: #{tpu_custom_call.1} parent=1 // pred_check
      _
    $region3: #{tpu_custom_call.1} parent=1 // pred_check_branch
      %11 = sbr.rel (0) target = $region5
    $region4: #{tpu_custom_call.1} parent=1 // pred_region
      _
    $region5: #{tpu_custom_call.1} parent=1 // pred_fallthru
      _
    // Predicated region
    $region6: #{tpu_custom_call.1} parent=1 // pred_check
      _
    $region7: #{tpu_custom_call.1} parent=1 // pred_check_branch
      %13 = sbr.rel (0) target = $region9
    $region8: #{tpu_custom_call.1} parent=1 // pred_region
      _
    $region9: #{tpu_custom_call.1} parent=1 // pred_fallthru
      _
    // Predicated region
    $region10: #{tpu_custom_call.1} parent=1 // pred_check
      _
    $region11: #{tpu_custom_call.1} parent=1 // pred_check_branch
      %15 = sbr.rel (0) target = $region13
    $region12: #{tpu_custom_call.1} parent=1 // pred_region
      _
    $region13: #{tpu_custom_call.1} parent=1 // pred_fallthru
      _
    // Predicated region
    $region14: #{tpu_custom_call.1} parent=1 // pred_check
      _
    $region15: #{tpu_custom_call.1} parent=1 // pred_check_branch
      %17 = sbr.rel (0) target = $region17
    $region16: #{tpu_custom_call.1} parent=1 // pred_region
      _
    $region17: #{tpu_custom_call.1} parent=1 // pred_fallthru
      _
    %v18 = vld [vmem:[%s1] sm:$0xff]
    %v19 = vld [vmem:[%s1 + $0x8] sm:$0xff]
    %v20 = vld [vmem:[%s1 + $0x10] sm:$0xff]
    %v21 = vld [vmem:[%s1 + $0x18] sm:$0xff]
    %v22 = vld [vmem:[%s1 + $0x20] sm:$0xff]
    %v23 = vld [vmem:[%s1 + $0x28] sm:$0xff]
    %v24 = vld [vmem:[%s1 + $0x30] sm:$0xff]
    %v25 = vld [vmem:[%s1 + $0x38] sm:$0xff]
    %v26 = vld [vmem:[%s1 + $0x40] sm:$0xff]
    %v27 = vld [vmem:[%s1 + $0x48] sm:$0xff]
    %v28 = vld [vmem:[%s1 + $0x50] sm:$0xff]
    %v29 = vld [vmem:[%s1 + $0x58] sm:$0xff]
    %v30 = vld [vmem:[%s1 + $0x60] sm:$0xff]
    %v31 = vld [vmem:[%s1 + $0x68] sm:$0xff]
    %v32 = vld [vmem:[%s1 + $0x70] sm:$0xff]
    %v33 = vld [vmem:[%s1 + $0x78] sm:$0xff]
    %v34 = vld [vmem:[%s0] sm:$0x1]
    %v36 = vlaneseq
    %v37 = vshrl.u32 %v36, 7
    %v38 = vsub.s32 0, %v37
    %v39 = vrot.slane %v34, %v38
    %v41 = vmul.f32 %v18, %v39
    %v42 = vmul.f32 %v19, %v39
    %v43 = vmul.f32 %v20, %v39
    %v44 = vmul.f32 %v21, %v39
    %v45 = vmul.f32 %v22, %v39
    %v46 = vmul.f32 %v23, %v39
    %v47 = vmul.f32 %v24, %v39
    %v48 = vmul.f32 %v25, %v39
    %v49 = vmul.f32 %v26, %v39
    %v50 = vmul.f32 %v27, %v39
    %v51 = vmul.f32 %v28, %v39
    %v52 = vmul.f32 %v29, %v39
    %v53 = vmul.f32 %v30, %v39
    %v54 = vmul.f32 %v31, %v39
    %v55 = vmul.f32 %v32, %v39
    %v56 = vmul.f32 %v33, %v39
    %v57 = vld [vmem:[%s2] sm:$0xff]
    %v58 = vld [vmem:[%s2 + $0x8] sm:$0xff]
    %v59 = vld [vmem:[%s2 + $0x10] sm:$0xff]
    %v60 = vld [vmem:[%s2 + $0x18] sm:$0xff]
    %v61 = vld [vmem:[%s2 + $0x20] sm:$0xff]
    %v62 = vld [vmem:[%s2 + $0x28] sm:$0xff]
    %v63 = vld [vmem:[%s2 + $0x30] sm:$0xff]
    %v64 = vld [vmem:[%s2 + $0x38] sm:$0xff]
    %v65 = vld [vmem:[%s2 + $0x40] sm:$0xff]
    %v66 = vld [vmem:[%s2 + $0x48] sm:$0xff]
    %v67 = vld [vmem:[%s2 + $0x50] sm:$0xff]
    %v68 = vld [vmem:[%s2 + $0x58] sm:$0xff]
    %v69 = vld [vmem:[%s2 + $0x60] sm:$0xff]
    %v70 = vld [vmem:[%s2 + $0x68] sm:$0xff]
    %v71 = vld [vmem:[%s2 + $0x70] sm:$0xff]
    %v72 = vld [vmem:[%s2 + $0x78] sm:$0xff]
    %v73 = vld [vmem:[%s3] sm:$0x1]
    %v75 = vlaneseq
    %v76 = vshrl.u32 %v75, 7
    %v77 = vsub.s32 0, %v76
    %v78 = vrot.slane %v73, %v77
    %vm80 = vcmask 261120
    %v82 = vsel %vm80, %v41, 0
    %v85 = vsel %vm80, %v42, 0
    %v88 = vsel %vm80, %v43, 0
    %v91 = vsel %vm80, %v44, 0
    %v94 = vsel %vm80, %v45, 0
    %v97 = vsel %vm80, %v46, 0
    %v100 = vsel %vm80, %v47, 0
    %v103 = vsel %vm80, %v48, 0
    %v106 = vsel %vm80, %v49, 0
    %v109 = vsel %vm80, %v50, 0
    %v112 = vsel %vm80, %v51, 0
    %v115 = vsel %vm80, %v52, 0
    %v118 = vsel %vm80, %v53, 0
    %v121 = vsel %vm80, %v54, 0
    %v124 = vsel %vm80, %v55, 0
    %v127 = vsel %vm80, %v56, 0
    %v130 = vsel %vm80, %v57, 0
    %v133 = vsel %vm80, %v58, 0
    %v136 = vsel %vm80, %v59, 0
    %v139 = vsel %vm80, %v60, 0
    %v142 = vsel %vm80, %v61, 0
    %v145 = vsel %vm80, %v62, 0
    %v148 = vsel %vm80, %v63, 0
    %v151 = vsel %vm80, %v64, 0
    %v154 = vsel %vm80, %v65, 0
    %v157 = vsel %vm80, %v66, 0
    %v160 = vsel %vm80, %v67, 0
    %v163 = vsel %vm80, %v68, 0
    %v166 = vsel %vm80, %v69, 0
    %v169 = vsel %vm80, %v70, 0
    %v172 = vsel %vm80, %v71, 0
    %v175 = vsel %vm80, %v72, 0
    %177 = vmatprep.subr.mxu0 0.0
    %178 = vmatpush1.xpose.msra.mxu0 %v175
    %179 = vmatprep.subr.mxu0 0.0
    %180 = vmatpush1.xpose.msra.mxu0 %v172
    %181 = vmatprep.subr.mxu0 0.0
    %182 = vmatpush1.xpose.msra.mxu0 %v169
    %183 = vmatprep.subr.mxu0 0.0
    %184 = vmatpush1.xpose.msra.mxu0 %v166
    %185 = vmatprep.subr.mxu0 0.0
    %186 = vmatpush1.xpose.msra.mxu0 %v163
    %187 = vmatprep.subr.mxu0 0.0
    %188 = vmatpush1.xpose.msra.mxu0 %v160
    %189 = vmatprep.subr.mxu0 0.0
    %190 = vmatpush1.xpose.msra.mxu0 %v157
    %191 = vmatprep.subr.mxu0 0.0
    %192 = vmatpush1.xpose.msra.mxu0 %v154
    %193 = vmatprep.subr.mxu0 0.0
    %194 = vmatpush1.xpose.msra.mxu0 %v151
    %195 = vmatprep.subr.mxu0 0.0
    %196 = vmatpush1.xpose.msra.mxu0 %v148
    %197 = vmatprep.subr.mxu0 0.0
    %198 = vmatpush1.xpose.msra.mxu0 %v145
    %199 = vmatprep.subr.mxu0 0.0
    %200 = vmatpush1.xpose.msra.mxu0 %v142
    %201 = vmatprep.subr.mxu0 0.0
    %202 = vmatpush1.xpose.msra.mxu0 %v139
    %203 = vmatprep.subr.mxu0 0.0
    %204 = vmatpush1.xpose.msra.mxu0 %v136
    %205 = vmatprep.subr.mxu0 0.0
    %206 = vmatpush1.xpose.msra.mxu0 %v133
    %207 = vmatprep.subr.mxu0 0.0
    %208 = vmatpush1.xpose.msra.mxu0 %v130
    %209 = vmatprep.subr.mxu0 0.0
    %210 = vmatpush2.xpose.msra.mxu0 0.0
    %211 = vmatprep.subr.mxu0 0.0
    %212 = vmatpush2.xpose.msra.mxu0 0.0
    %213 = vmatprep.subr.mxu0 0.0
    %214 = vmatpush2.xpose.msra.mxu0 0.0
    %215 = vmatprep.subr.mxu0 0.0
    %216 = vmatpush2.xpose.msra.mxu0 0.0
    %217 = vmatprep.subr.mxu0 0.0
    %218 = vmatpush2.xpose.msra.mxu0 0.0
    %219 = vmatprep.subr.mxu0 0.0
    %220 = vmatpush2.xpose.msra.mxu0 0.0
    %221 = vmatprep.subr.mxu0 0.0
    %222 = vmatpush2.xpose.msra.mxu0 0.0
    %223 = vmatprep.subr.mxu0 0.0
    %224 = vmatpush2.xpose.msra.mxu0 0.0
    %225 = vmatprep.subr.mxu0 0.0
    %226 = vmatpush2.xpose.msra.mxu0 0.0
    %227 = vmatprep.subr.mxu0 0.0
    %228 = vmatpush2.xpose.msra.mxu0 0.0
    %229 = vmatprep.subr.mxu0 0.0
    %230 = vmatpush2.xpose.msra.mxu0 0.0
    %231 = vmatprep.subr.mxu0 0.0
    %232 = vmatpush2.xpose.msra.mxu0 0.0
    %233 = vmatprep.subr.mxu0 0.0
    %234 = vmatpush2.xpose.msra.mxu0 0.0
    %235 = vmatprep.subr.mxu0 0.0
    %236 = vmatpush2.xpose.msra.mxu0 0.0
    %237 = vmatprep.subr.mxu0 0.0
    %238 = vmatpush2.xpose.msra.mxu0 0.0
    %239 = vmatprep.subr.mxu0 0.0
    %240 = vmatpush2.xpose.msra.mxu0 0.0
    %241 = vmatprep.mubr.f32.mxu0 0.0
    %242 = vmatmul.mubr.f32.gmra.mxu0 %v82
    %v243 = vpop.f32.mrf.mxu0
    %v244 = vadd.f32 %v78, %v243
    %v245 = vpop.f32.mrf.mxu0
    %246 = vmatprep.mubr.f32.mxu0 0.0
    %247 = vmatmul.mubr.f32.gmra.mxu0 %v85
    %v248 = vpop.f32.mrf.mxu0
    %v249 = vadd.f32 %v78, %v248
    %v250 = vpop.f32.mrf.mxu0
    %251 = vmatprep.mubr.f32.mxu0 0.0
    %252 = vmatmul.mubr.f32.gmra.mxu0 %v88
    %v253 = vpop.f32.mrf.mxu0
    %v254 = vadd.f32 %v78, %v253
    %v255 = vpop.f32.mrf.mxu0
    %256 = vmatprep.mubr.f32.mxu0 0.0
    %257 = vmatmul.mubr.f32.gmra.mxu0 %v91
    %v258 = vpop.f32.mrf.mxu0
    %v259 = vadd.f32 %v78, %v258
    %v260 = vpop.f32.mrf.mxu0
    %261 = vmatprep.mubr.f32.mxu0 0.0
    %262 = vmatmul.mubr.f32.gmra.mxu0 %v94
    %v263 = vpop.f32.mrf.mxu0
    %v264 = vadd.f32 %v78, %v263
    %v265 = vpop.f32.mrf.mxu0
    %266 = vmatprep.mubr.f32.mxu0 0.0
    %267 = vmatmul.mubr.f32.gmra.mxu0 %v97
    %v268 = vpop.f32.mrf.mxu0
    %v269 = vadd.f32 %v78, %v268
    %v270 = vpop.f32.mrf.mxu0
    %271 = vmatprep.mubr.f32.mxu0 0.0
    %272 = vmatmul.mubr.f32.gmra.mxu0 %v100
    %v273 = vpop.f32.mrf.mxu0
    %v274 = vadd.f32 %v78, %v273
    %v275 = vpop.f32.mrf.mxu0
    %276 = vmatprep.mubr.f32.mxu0 0.0
    %277 = vmatmul.mubr.f32.gmra.mxu0 %v103
    %v278 = vpop.f32.mrf.mxu0
    %v279 = vadd.f32 %v78, %v278
    %v280 = vpop.f32.mrf.mxu0
    %281 = vmatprep.mubr.f32.mxu0 0.0
    %282 = vmatmul.mubr.f32.gmra.mxu0 %v106
    %v283 = vpop.f32.mrf.mxu0
    %v284 = vadd.f32 %v78, %v283
    %v285 = vpop.f32.mrf.mxu0
    %286 = vmatprep.mubr.f32.mxu0 0.0
    %287 = vmatmul.mubr.f32.gmra.mxu0 %v109
    %v288 = vpop.f32.mrf.mxu0
    %v289 = vadd.f32 %v78, %v288
    %v290 = vpop.f32.mrf.mxu0
    %291 = vmatprep.mubr.f32.mxu0 0.0
    %292 = vmatmul.mubr.f32.gmra.mxu0 %v112
    %v293 = vpop.f32.mrf.mxu0
    %v294 = vadd.f32 %v78, %v293
    %v295 = vpop.f32.mrf.mxu0
    %296 = vmatprep.mubr.f32.mxu0 0.0
    %297 = vmatmul.mubr.f32.gmra.mxu0 %v115
    %v298 = vpop.f32.mrf.mxu0
    %v299 = vadd.f32 %v78, %v298
    %v300 = vpop.f32.mrf.mxu0
    %301 = vmatprep.mubr.f32.mxu0 0.0
    %302 = vmatmul.mubr.f32.gmra.mxu0 %v118
    %v303 = vpop.f32.mrf.mxu0
    %v304 = vadd.f32 %v78, %v303
    %v305 = vpop.f32.mrf.mxu0
    %306 = vmatprep.mubr.f32.mxu0 0.0
    %307 = vmatmul.mubr.f32.gmra.mxu0 %v121
    %v308 = vpop.f32.mrf.mxu0
    %v309 = vadd.f32 %v78, %v308
    %v310 = vpop.f32.mrf.mxu0
    %311 = vmatprep.mubr.f32.mxu0 0.0
    %312 = vmatmul.mubr.f32.gmra.mxu0 %v124
    %v313 = vpop.f32.mrf.mxu0
    %v314 = vadd.f32 %v78, %v313
    %v315 = vpop.f32.mrf.mxu0
    %316 = vmatprep.mubr.f32.mxu0 0.0
    %317 = vmatmul.mubr.f32.gmra.mxu0 %v127
    %v318 = vpop.f32.mrf.mxu0
    %v319 = vadd.f32 %v78, %v318
    %v320 = vpop.f32.mrf.mxu0
    %321 = vdwg.mxu0
    %v322 = vxor.u32 %v244, 2147483648
    %v323 = vxor.u32 %v249, 2147483648
    %v324 = vxor.u32 %v254, 2147483648
    %v325 = vxor.u32 %v259, 2147483648
    %v326 = vxor.u32 %v264, 2147483648
    %v327 = vxor.u32 %v269, 2147483648
    %v328 = vxor.u32 %v274, 2147483648
    %v329 = vxor.u32 %v279, 2147483648
    %v330 = vxor.u32 %v284, 2147483648
    %v331 = vxor.u32 %v289, 2147483648
    %v332 = vxor.u32 %v294, 2147483648
    %v333 = vxor.u32 %v299, 2147483648
    %v334 = vxor.u32 %v304, 2147483648
    %v335 = vxor.u32 %v309, 2147483648
    %v336 = vxor.u32 %v314, 2147483648
    %v337 = vxor.u32 %v319, 2147483648
    %v338 = vmul.f32 %v322, 1.442695
    %v339 = vpow.pop %v338
    %v340 = vmul.f32 %v323, 1.442695
    %v341 = vpow.pop %v340
    %v342 = vmul.f32 %v324, 1.442695
    %v343 = vpow.pop %v342
    %v344 = vmul.f32 %v325, 1.442695
    %v345 = vpow.pop %v344
    %v346 = vmul.f32 %v326, 1.442695
    %v347 = vpow.pop %v346
    %v348 = vmul.f32 %v327, 1.442695
    %v349 = vpow.pop %v348
    %v350 = vmul.f32 %v328, 1.442695
    %v351 = vpow.pop %v350
    %v352 = vmul.f32 %v329, 1.442695
    %v353 = vpow.pop %v352
    %v354 = vmul.f32 %v330, 1.442695
    %v355 = vpow.pop %v354
    %v356 = vmul.f32 %v331, 1.442695
    %v357 = vpow.pop %v356
    %v358 = vmul.f32 %v332, 1.442695
    %v359 = vpow.pop %v358
    %v360 = vmul.f32 %v333, 1.442695
    %v361 = vpow.pop %v360
    %v362 = vmul.f32 %v334, 1.442695
    %v363 = vpow.pop %v362
    %v364 = vmul.f32 %v335, 1.442695
    %v365 = vpow.pop %v364
    %v366 = vmul.f32 %v336, 1.442695
    %v367 = vpow.pop %v366
    %v368 = vmul.f32 %v337, 1.442695
    %v369 = vpow.pop %v368
    %v370 = vadd.f32 %v339, 1.0
    %v371 = vadd.f32 %v341, 1.0
    %v372 = vadd.f32 %v343, 1.0
    %v373 = vadd.f32 %v345, 1.0
    %v374 = vadd.f32 %v347, 1.0
    %v375 = vadd.f32 %v349, 1.0
    %v376 = vadd.f32 %v351, 1.0
    %v377 = vadd.f32 %v353, 1.0
    %v378 = vadd.f32 %v355, 1.0
    %v379 = vadd.f32 %v357, 1.0
    %v380 = vadd.f32 %v359, 1.0
    %v381 = vadd.f32 %v361, 1.0
    %v382 = vadd.f32 %v363, 1.0
    %v383 = vadd.f32 %v365, 1.0
    %v384 = vadd.f32 %v367, 1.0
    %v385 = vadd.f32 %v369, 1.0
    %v386 = vrcp.pop %v370
    %v387 = vmul.f32 1.0, %v386
    %v388 = vrcp.pop %v371
    %v389 = vmul.f32 1.0, %v388
    %v390 = vrcp.pop %v372
    %v391 = vmul.f32 1.0, %v390
    %v392 = vrcp.pop %v373
    %v393 = vmul.f32 1.0, %v392
    %v394 = vrcp.pop %v374
    %v395 = vmul.f32 1.0, %v394
    %v396 = vrcp.pop %v375
    %v397 = vmul.f32 1.0, %v396
    %v398 = vrcp.pop %v376
    %v399 = vmul.f32 1.0, %v398
    %v400 = vrcp.pop %v377
    %v401 = vmul.f32 1.0, %v400
    %v402 = vrcp.pop %v378
    %v403 = vmul.f32 1.0, %v402
    %v404 = vrcp.pop %v379
    %v405 = vmul.f32 1.0, %v404
    %v406 = vrcp.pop %v380
    %v407 = vmul.f32 1.0, %v406
    %v408 = vrcp.pop %v381
    %v409 = vmul.f32 1.0, %v408
    %v410 = vrcp.pop %v382
    %v411 = vmul.f32 1.0, %v410
    %v412 = vrcp.pop %v383
    %v413 = vmul.f32 1.0, %v412
    %v414 = vrcp.pop %v384
    %v415 = vmul.f32 1.0, %v414
    %v416 = vrcp.pop %v385
    %v417 = vmul.f32 1.0, %v416
    %418 = vst [vmem:[#allocation2] sm:$0xff] %v387
    %419 = vst [vmem:[#allocation2 + $0x8] sm:$0xff] %v389
    %420 = vst [vmem:[#allocation2 + $0x10] sm:$0xff] %v391
    %421 = vst [vmem:[#allocation2 + $0x18] sm:$0xff] %v393
    %422 = vst [vmem:[#allocation2 + $0x20] sm:$0xff] %v395
    %423 = vst [vmem:[#allocation2 + $0x28] sm:$0xff] %v397
    %424 = vst [vmem:[#allocation2 + $0x30] sm:$0xff] %v399
    %425 = vst [vmem:[#allocation2 + $0x38] sm:$0xff] %v401
    %426 = vst [vmem:[#allocation2 + $0x40] sm:$0xff] %v403
    %427 = vst [vmem:[#allocation2 + $0x48] sm:$0xff] %v405
    %428 = vst [vmem:[#allocation2 + $0x50] sm:$0xff] %v407
    %429 = vst [vmem:[#allocation2 + $0x58] sm:$0xff] %v409
    %430 = vst [vmem:[#allocation2 + $0x60] sm:$0xff] %v411
    %431 = vst [vmem:[#allocation2 + $0x68] sm:$0xff] %v413
    %432 = vst [vmem:[#allocation2 + $0x70] sm:$0xff] %v415
    %433 = vst [vmem:[#allocation2 + $0x78] sm:$0xff] %v417
    // Predicated region
    $region18: #{tpu_custom_call.1} parent=1 // pred_check
      _
    $region19: #{tpu_custom_call.1} parent=1 // pred_check_branch
      %435 = sbr.rel (0) target = $region21
    $region20: #{tpu_custom_call.1} parent=1 // pred_region
      %s437 = ssub.s32 2048, 2048
      %438 = vsyncadd [#allocation3], %s437
      %s439 = sshll.u32 [#allocation2], 4
      %s440 = int_to_ptr.vmem [resolvable:$true] %s439
      %445 = dma.vmem_to_hbm [thread:$0]  %s440, 2048, %s4, [#allocation3], 128, 128, 8
    $region21: #{tpu_custom_call.1} parent=1 // pred_fallthru
      _
    // Predicated region
    $region22: #{tpu_custom_call.1} parent=1 // pred_check
      _
    $region23: #{tpu_custom_call.1} parent=1 // pred_check_branch
      %447 = sbr.rel (0) target = $region25
    $region24: #{tpu_custom_call.1} parent=1 // pred_region
      %448 = dma.done [#allocation3], 2048
    $region25: #{tpu_custom_call.1} parent=1 // pred_fallthru
      _
    %449 = vsyncpa [#allocation3], 1

</llo_original>
